<compile_context>
chip_gen: v5e
topology: v5e:2x2
jax: 0.10.0
libtpu: 0.0.40
codegen_flags: <defaults>
</compile_context>

<pallas_src>
import jax
import jax.numpy as jnp
from jax.experimental import pallas as pl
from jax.experimental.pallas import tpu as pltpu


PAD = 128                                    # lane width of the slab / output
IN_PAD = 8                                   # padded input width (features + ones lane)
LAYER_DIMS = [(4, 16), (16, 12), (12, 8), (8, 3)]   # (in, out) per Linear
IN_DIM = LAYER_DIMS[0][0]                    # 4
HID_DIM = LAYER_DIMS[-1][0]                  # 8  (activations after 3rd ReLU)
OUT_DIM = LAYER_DIMS[-1][1]                  # 3


def _round_up(n, m):
    return ((n + m - 1) // m) * m


def simplenet_kernel(params_ref, x_ref, out_ref):
    """params_ref: [4, 128, 128]  weights ([in,out] layout), biases folded into
                                  the ones-lane row; layer 3 also carries an 8x8
                                  identity that passes the hidden activations
                                  through to output lanes 0..7.
       x_ref:      [TB, 8]        features in lanes 0..3, lane 7 == 1.0.
       out_ref:    [TB, 128]      lanes 0..7 = hidden, lanes 8..10 = logits.
    """
    cdt = params_ref.dtype            # f32, or bf16 when packed for v5e
    # Layer 1: [TB,8] @ [8,128] -- static, sublane-aligned K=8 slice of slab 0.
    # b1 rides row 7 (the input ones lane); slab[0][7,127] == 1.0 moves the
    # ones lane to lane 127 for the remaining layers.
    h = jnp.maximum(
        jnp.dot(x_ref[...].astype(cdt), params_ref[0, 0:8, :],
                preferred_element_type=jnp.float32),
        0.0)
    # Layers 2, 3: [TB,128] @ [128,128] + ReLU; bias via ones lane (lane 127),
    # slab[l,127,127] == 1.0 keeps the ones lane alive (ReLU(1) == 1).
    for layer in (1, 2):
        h = jnp.maximum(
            jnp.dot(h.astype(cdt), params_ref[layer],
                    preferred_element_type=jnp.float32),
            0.0)
    # Layer 4 (no ReLU) fused with the hidden pass-through: slab[3][:8,:8] == I
    # copies h lanes 0..7 into out lanes 0..7, W4/b4 produce out lanes 8..10.
    # One unmasked, lane-dense [TB,128] store -> single writeback DMA.
    out_ref[...] = jnp.dot(h.astype(cdt), params_ref[3],
                           preferred_element_type=jnp.float32)


def _pick_tile(batch):
    """Default batch tile: as large as practical (up to 2048 rows), but capped
    so the 'parallel' batch grid has >= 2 steps whenever batch >= 16 rows, so
    both TensorCores get work on v7x (extra pipelining elsewhere is harmless)."""
    rows = _round_up(max(batch, 1), 8)
    if rows < 16:
        return rows
    return min(2048, _round_up(pl.cdiv(rows, 2), 8))


def simplenet_forward_merged(x_pad, param_slab, *, tb):
    """Core pallas_call.  x_pad: [Bp, 8] pre-padded (Bp % tb == 0, lane 7 == 1).
    Returns merged [Bp, 128] f32 (lanes 0..7 = hidden, lanes 8..10 = output).
    Callers that keep data in this layout avoid all wrapper pad/slice traffic."""
    Bp = x_pad.shape[0]
    assert Bp % tb == 0 and x_pad.shape[1] == IN_PAD
    return pl.pallas_call(
        simplenet_kernel,
        out_shape=jax.ShapeDtypeStruct((Bp, PAD), jnp.float32),
        grid_spec=pltpu.PrefetchScalarGridSpec(
            num_scalar_prefetch=0,
            grid=(Bp // tb,),
            in_specs=[
                # Param slab: constant index_map -> fetched once, VMEM-resident.
                pl.BlockSpec((4, PAD, PAD), lambda i: (0, 0, 0)),
                # Narrow (8-lane) batch tiles of x, pipelined against compute.
                pl.BlockSpec((tb, IN_PAD), lambda i: (i, 0)),
            ],
            out_specs=pl.BlockSpec((tb, PAD), lambda i: (i, 0)),
        ),
        compiler_params=pltpu.CompilerParams(
            dimension_semantics=("parallel",)),
    )(param_slab, x_pad)


def simplenet_forward(x, param_slab, *, tb=None):
    """Convenience wrapper.  x: [B, 4] float32.  param_slab from pack_params().
    Returns (output [B, 3], hidden [B, 8]) matching the PyTorch module."""
    B = x.shape[0]
    if tb is None:
        tb = _pick_tile(B)
    tb = _round_up(tb, 8)
    Bp = _round_up(max(B, 1), tb)

    # 8-lane pad (32 B/row of wrapper traffic): features 0..3, ones lane at 7.
    x_pad = jnp.zeros((Bp, IN_PAD), jnp.float32)
    x_pad = x_pad.at[:B, :IN_DIM].set(x.astype(jnp.float32))
    x_pad = x_pad.at[:, IN_PAD - 1].set(1.0)

    merged = simplenet_forward_merged(x_pad, param_slab, tb=tb)
    hidden = merged[:B, :HID_DIM]
    output = merged[:B, HID_DIM:HID_DIM + OUT_DIM]
    return output, hidden


def init_params(key):
    """Deterministic synthetic init. Weights stored as [in, out] (torch is [out, in])."""
    params = {}
    for i, (din, dout) in enumerate(LAYER_DIMS, start=1):
        key, kw, kb = jax.random.split(key, 3)
        scale = 1.0 / jnp.sqrt(float(din))
        params[f"w{i}"] = (jax.random.uniform(kw, (din, dout), jnp.float32,
                                              minval=-1.0, maxval=1.0) * scale)
        params[f"b{i}"] = (jax.random.uniform(kb, (dout,), jnp.float32,
                                              minval=-1.0, maxval=1.0) * scale)
    return params


def pack_params(params, dtype=jnp.float32):
    """Pack all layers into one zero-padded [4, 128, 128] slab.

      slab[0, :4, :16]  = W1        slab[0, 7, :16]    = b1
      slab[0, 7, 127]   = 1.0       (input ones lane 7 -> lane 127)
      slab[1, :16, :12] = W2        slab[1, 127, :12]  = b2   slab[1,127,127] = 1
      slab[2, :12, :8]  = W3        slab[2, 127, :8]   = b3   slab[2,127,127] = 1
      slab[3, :8, :8]   = I_8       (hidden pass-through -> output lanes 0..7)
      slab[3, :8, 8:11] = W4        slab[3, 127, 8:11] = b4   (output lanes 8..10)

    All other (padded) entries are exactly 0.0 so padded activation lanes stay 0.
    Use dtype=jnp.bfloat16 on v5e (bf16-native MXU); accumulation stays f32.
    """
    slab = jnp.zeros((4, PAD, PAD), jnp.float32)
    # Layer 1 (ones lane arrives at input lane IN_PAD-1 == 7).
    d0_in, d0_out = LAYER_DIMS[0]
    slab = slab.at[0, :d0_in, :d0_out].set(params["w1"])
    slab = slab.at[0, IN_PAD - 1, :d0_out].set(params["b1"])
    slab = slab.at[0, IN_PAD - 1, PAD - 1].set(1.0)
    # Layers 2 and 3 (ones lane at lane 127).
    for l in (1, 2):
        din, dout = LAYER_DIMS[l]
        slab = slab.at[l, :din, :dout].set(params[f"w{l + 1}"])
        slab = slab.at[l, PAD - 1, :dout].set(params[f"b{l + 1}"])
        slab = slab.at[l, PAD - 1, PAD - 1].set(1.0)
    # Layer 4: identity pass-through of hidden + W4/b4 shifted to lanes 8..10.
    din, dout = LAYER_DIMS[3]
    slab = slab.at[3, :din, :din].set(jnp.eye(din, dtype=jnp.float32))
    slab = slab.at[3, :din, din:din + dout].set(params["w4"])
    slab = slab.at[3, PAD - 1, din:din + dout].set(params["b4"])
    return slab.astype(dtype)


def reference_forward(x, params):
    """Pure-JAX reference of the same forward (unpadded params)."""
    h = x
    for l in range(1, 4):
        h = jnp.maximum(h @ params[f"w{l}"] + params[f"b{l}"], 0.0)
    out = h @ params["w4"] + params["b4"]
    return out, h


if __name__ == "__main__":
    key = jax.random.PRNGKey(0)
    k_x, k_p = jax.random.split(key)

    B = 32
    x = jax.random.normal(k_x, (B, IN_DIM), dtype=jnp.float32)
    params = init_params(k_p)
    slab = pack_params(params)   # f32; pass dtype=jnp.bfloat16 on v5e

    # Default tiling (_pick_tile(32) -> tb=16, grid=(2,)) exercises the
    # pipelined, dual-TensorCore path; large batches get tiles up to 2048 rows.
    out, hidden = simplenet_forward(x, slab)
    out = jax.block_until_ready(out)
    hidden = jax.block_until_ready(hidden)

    ref_out, ref_hidden = reference_forward(x, params)
    assert out.shape == (B, OUT_DIM) and hidden.shape == (B, HID_DIM)
    assert jnp.allclose(out, ref_out, atol=1e-5, rtol=1e-5)
    assert jnp.allclose(hidden, ref_hidden, atol=1e-5, rtol=1e-5)

    print("KERNEL_OK")
</pallas_src>

<mosaic_0001>
module attributes {stable_mosaic.version = 11 : i64} {
  func.func @simplenet_kernel(%arg0: i32, %arg1: memref<4x128x128xf32, #tpu.memory_space<vmem>>, %arg2: memref<16x8xf32, #tpu.memory_space<vmem>>, %arg3: memref<16x128xf32, #tpu.memory_space<vmem>>) attributes {dimension_semantics = [#tpu.dimension_semantics<parallel>], iteration_bounds = array<i64: 2>, scalar_prefetch = 0 : i64, scratch_operands = 0 : i64, tpu.core_type = #tpu.core_type<tc>, window_params = [{pipeline_mode = #tpu.pipeline_mode<synchronous>, transform_indices = @transform_0, window_bounds = array<i64: 4, 128, 128>}, {transform_indices = @transform_1, window_bounds = array<i64: 16, 8>}, {transform_indices = @transform_2, window_bounds = array<i64: 16, 128>}]} {
    %c0 = arith.constant 0 : index
    %c0_0 = arith.constant 0 : index
    %0 = vector.load %arg2[%c0, %c0_0] : memref<16x8xf32, #tpu.memory_space<vmem>>, vector<16x8xf32>
    %c0_1 = arith.constant 0 : index
    %c0_2 = arith.constant 0 : index
    %c0_3 = arith.constant 0 : index
    %1 = vector.load %arg1[%c0_1, %c0_2, %c0_3] : memref<4x128x128xf32, #tpu.memory_space<vmem>>, vector<1x8x128xf32>
    %2 = vector.shape_cast %1 : vector<1x8x128xf32> to vector<8x128xf32>
    %cst = arith.constant dense<0.000000e+00> : vector<16x128xf32>
    %3 = tpu.matmul %0, %2, %cst {dimension_numbers = #tpu.dot_dimension_numbers<[1], [0], [0], [1], [0, 0, 1, 1], [], []>} : vector<16x8xf32>, vector<8x128xf32>, vector<16x128xf32> -> vector<16x128xf32>
    %cst_4 = arith.constant 0.000000e+00 : f32
    %4 = vector.broadcast %cst_4 : f32 to vector<16x128xf32>
    %5 = arith.maximumf %3, %4 : vector<16x128xf32>
    %c1 = arith.constant 1 : index
    %c0_5 = arith.constant 0 : index
    %c0_6 = arith.constant 0 : index
    %6 = vector.load %arg1[%c1, %c0_5, %c0_6] : memref<4x128x128xf32, #tpu.memory_space<vmem>>, vector<1x128x128xf32>
    %7 = vector.shape_cast %6 : vector<1x128x128xf32> to vector<128x128xf32>
    %cst_7 = arith.constant dense<0.000000e+00> : vector<16x128xf32>
    %8 = tpu.matmul %5, %7, %cst_7 {dimension_numbers = #tpu.dot_dimension_numbers<[1], [0], [0], [1], [0, 0, 1, 1], [], []>} : vector<16x128xf32>, vector<128x128xf32>, vector<16x128xf32> -> vector<16x128xf32>
    %cst_8 = arith.constant 0.000000e+00 : f32
    %9 = vector.broadcast %cst_8 : f32 to vector<16x128xf32>
    %10 = arith.maximumf %8, %9 : vector<16x128xf32>
    %c2 = arith.constant 2 : index
    %c0_9 = arith.constant 0 : index
    %c0_10 = arith.constant 0 : index
    %11 = vector.load %arg1[%c2, %c0_9, %c0_10] : memref<4x128x128xf32, #tpu.memory_space<vmem>>, vector<1x128x128xf32>
    %12 = vector.shape_cast %11 : vector<1x128x128xf32> to vector<128x128xf32>
    %cst_11 = arith.constant dense<0.000000e+00> : vector<16x128xf32>
    %13 = tpu.matmul %10, %12, %cst_11 {dimension_numbers = #tpu.dot_dimension_numbers<[1], [0], [0], [1], [0, 0, 1, 1], [], []>} : vector<16x128xf32>, vector<128x128xf32>, vector<16x128xf32> -> vector<16x128xf32>
    %cst_12 = arith.constant 0.000000e+00 : f32
    %14 = vector.broadcast %cst_12 : f32 to vector<16x128xf32>
    %15 = arith.maximumf %13, %14 : vector<16x128xf32>
    %c3 = arith.constant 3 : index
    %c0_13 = arith.constant 0 : index
    %c0_14 = arith.constant 0 : index
    %16 = vector.load %arg1[%c3, %c0_13, %c0_14] : memref<4x128x128xf32, #tpu.memory_space<vmem>>, vector<1x128x128xf32>
    %17 = vector.shape_cast %16 : vector<1x128x128xf32> to vector<128x128xf32>
    %cst_15 = arith.constant dense<0.000000e+00> : vector<16x128xf32>
    %18 = tpu.matmul %15, %17, %cst_15 {dimension_numbers = #tpu.dot_dimension_numbers<[1], [0], [0], [1], [0, 0, 1, 1], [], []>} : vector<16x128xf32>, vector<128x128xf32>, vector<16x128xf32> -> vector<16x128xf32>
    %c0_16 = arith.constant 0 : index
    %c0_17 = arith.constant 0 : index
    %19 = vector.load %arg3[%c0_16, %c0_17] : memref<16x128xf32, #tpu.memory_space<vmem>>, vector<16x128xf32>
    tpu.vector_store %arg3[%c0_16, %c0_17], %18 {strides = array<i32>} : memref<16x128xf32, #tpu.memory_space<vmem>>, vector<16x128xf32>,
    return
  }
  func.func @transform_0(%arg0: i32) -> (i32, i32, i32) {
    %c0_i32 = arith.constant 0 : i32
    %c0_i32_0 = arith.constant 0 : i32
    %c0_i32_1 = arith.constant 0 : i32
    %c0_i32_2 = arith.constant 0 : i32
    return %c0_i32, %c0_i32_0, %c0_i32_1 : i32, i32, i32
  }
  func.func @transform_1(%arg0: i32) -> (i32, i32) {
    %c0_i32 = arith.constant 0 : i32
    %c0_i32_0 = arith.constant 0 : i32
    return %arg0, %c0_i32 : i32, i32
  }
  func.func @transform_2(%arg0: i32) -> (i32, i32) {
    %c0_i32 = arith.constant 0 : i32
    %c0_i32_0 = arith.constant 0 : i32
    return %arg0, %c0_i32 : i32, i32
  }
}

</mosaic_0001>

<llo_original>
// kernel: tpu_custom_call.1
$region0: #{tpu_custom_call.1}
  #allocation0 [shape = 'u32[]', space=smem, size = 0x4, offset = 0x4, fixed_abs, tag = 'smem constant byte address 0x4 - core index']
  #allocation1 [shape = 'u32[72,128]{1,0:T(1,128)}', space=vmem, size = 0x9000, scoped, tag = 'internal scratch']
  %s0 = inlined_call_operand.hbm [shape: f32[4,128,128], index: 0, kind: input, shape index: {}]
  %s1 = inlined_call_operand.vmem [shape: f32[32,8], index: 1, kind: input, shape index: {}]
  %s2 = inlined_call_operand.hbm [shape: f32[32,128], index: 2, kind: output, shape index: {}]
  %s3 = sld [smem:[#allocation0]]
  $region45: #{tpu_custom_call.1} parent=0
    _
  %s5 = ssub.s32 1, %s3
  %s6 = scalar_select 0, %s5, %s3
  $region1: #{tpu_custom_call.1} parent=0
    #allocation2 [shape = 'u8[262144]{0}', space=vmem, size = 0x40000, scoped, tag = 'input window, operand 0, single buffered']
    #allocation3 [shape = 's32[2]{0}', space=sflag, size = 0x8, scoped, tag = 'scoped memory for tpu_custom_call.1']
    #allocation4 [shape = 's32[2]{0}', space=sflag, size = 0x8, scoped, tag = 'scoped memory for tpu_custom_call.1']
    #allocation5 [shape = 'u8[16384]{0}', space=vmem, size = 0x4000, scoped, tag = 'output window, operand 0']
    %7 = vsyncpa [#allocation3], 0
    %8 = vsyncpa [#allocation4], 0
    %s9 = scalar_lea.sflag [#allocation4], 1
    %10 = vsyncpa %s9, 0
    loop: start=0, step=1, limit=4
    $region2: #{tpu_custom_call.1} parent=1 // loop_pre_header
      _
    $region3: #{tpu_custom_call.1} parent=1 // loop_header
      %s12 = sphi 0, %s16
      %p13 = scmp.ge.s32.totalorder %s12, 4
      %s20 = sphi 0, %s20
      %s22 = sphi 0, %s20
      %s23 = sphi 0, %s22
      %s37 = sphi 0, %s23
      %s43 = sphi 0, %s45
      %s46 = sphi 0, %s43
      %s47 = sphi 0, %s46
      %s63 = sphi 0, %s47
      %s69 = sphi 0, %s71
      %s72 = sphi 0, %s69
      %s73 = sphi 0, %s72
      %s89 = sphi 0, %s73
    $region4: #{tpu_custom_call.1} parent=1 // loop_header_branch
      %15 = sbr.rel (%p13) target = $region8
    $region5: #{tpu_custom_call.1} parent=1 // loop_body
      %s17 = ssub.s32 %s12, 1
      %s18 = ssub.s32 %s12, 2
      %s19 = sadd.s32 %s12, 1
      %s21 = sadd.s32 %s20, 1
      %p24 = scmp.eq.s32.totalorder %s12, 1
      %p25 = scmp.ne.s32.totalorder %s20, %s22
      %p26 = scmp.eq.s32.totalorder %s12, 0
      %p27 = por %p25, %p26
      %p28 = scmp.ne.s32.totalorder %s20, %s22
      %p29 = scmp.eq.s32.totalorder %s17, 1
      %p30 = por %p28, %p29
      %p31 = scmp.ne.s32.totalorder %s22, %s23
      %p32 = scmp.eq.s32.totalorder %s17, 0
      %p33 = por %p31, %p32
      %p34 = scmp.ne.s32.totalorder %s22, %s23
      %p35 = scmp.eq.s32.totalorder %s18, 1
      %p36 = por %p34, %p35
      %p38 = scmp.ne.s32.totalorder %s23, %s37
      %p39 = scmp.eq.s32.totalorder %s18, 0
      %p40 = por %p38, %p39
      %s41 = ssub.s32 %s12, %s19
      %p42 = scmp.eq.s32.totalorder %s41, 0
      %s44 = sadd.s32 %s43, 1
      %s45 = scalar_select %p42, %s43, %s44
      %p48 = pneg %p42
      %p49 = scmp.eq.s32.totalorder %s12, 1
      %p50 = por %p48, %p49
      %p51 = scmp.ne.s32.totalorder %s43, %s46
      %p52 = scmp.eq.s32.totalorder %s12, 0
      %p53 = por %p51, %p52
      %p54 = scmp.ne.s32.totalorder %s43, %s46
      %p55 = scmp.eq.s32.totalorder %s17, 1
      %p56 = por %p54, %p55
      %p57 = scmp.ne.s32.totalorder %s46, %s47
      %p58 = scmp.eq.s32.totalorder %s17, 0
      %p59 = por %p57, %p58
      %p60 = scmp.ne.s32.totalorder %s46, %s47
      %p61 = scmp.eq.s32.totalorder %s18, 1
      %p62 = por %p60, %p61
      %p64 = scmp.ne.s32.totalorder %s47, %s63
      %p65 = scmp.eq.s32.totalorder %s18, 0
      %p66 = por %p64, %p65
      %s67 = ssub.s32 %s12, %s19
      %p68 = scmp.eq.s32.totalorder %s67, 0
      %s70 = sadd.s32 %s69, 1
      %s71 = scalar_select %p68, %s69, %s70
      %p74 = pneg %p68
      %p75 = scmp.eq.s32.totalorder %s12, 1
      %p76 = por %p74, %p75
      %p77 = scmp.ne.s32.totalorder %s69, %s72
      %p78 = scmp.eq.s32.totalorder %s12, 0
      %p79 = por %p77, %p78
      %p80 = scmp.ne.s32.totalorder %s69, %s72
      %p81 = scmp.eq.s32.totalorder %s17, 1
      %p82 = por %p80, %p81
      %p83 = scmp.ne.s32.totalorder %s72, %s73
      %p84 = scmp.eq.s32.totalorder %s17, 0
      %p85 = por %p83, %p84
      %p86 = scmp.ne.s32.totalorder %s72, %s73
      %p87 = scmp.eq.s32.totalorder %s18, 1
      %p88 = por %p86, %p87
      %p90 = scmp.ne.s32.totalorder %s73, %s89
      %p91 = scmp.eq.s32.totalorder %s18, 0
      %p92 = por %p90, %p91
      %p93 = scmp.le.s32.totalorder 1, %s12
      %p94 = scmp.lt.s32.totalorder %s12, 3
      %p95 = pnand %p93, %p94
      %p96 = pneg %p95
      // Predicated region
      $region9: #{tpu_custom_call.1} parent=5 // pred_check
        _
      $region10: #{tpu_custom_call.1} parent=5 // pred_check_branch
        %98 = sbr.rel (%p95) target = $region12
      $region11: #{tpu_custom_call.1} parent=5 // pred_region
        %s99 = ssub.s32 %s12, 1
        // Predicated region
        $region13: #{tpu_custom_call.1} parent=11 // pred_check
          %p100 = pneg %p33
        $region14: #{tpu_custom_call.1} parent=11 // pred_check_branch
          %102 = sbr.rel (%p100) target = $region16
        $region15: #{tpu_custom_call.1} parent=11 // pred_region
          %104 = vsyncadd [#allocation3], 0
          %s105 = sshll.u32 %s0, 4
          %s106 = int_to_ptr.hbm [resolvable:$true] %s105
          %s107 = sshll.u32 [#allocation2], 4
          %s108 = int_to_ptr.vmem [resolvable:$true] %s107
          %113 = dma.hbm_to_vmem [thread:$0]  %s106, 8192, %s108, [#allocation3], 128, 128, 8
        $region16: #{tpu_custom_call.1} parent=11 // pred_fallthru
          _
      $region12: #{tpu_custom_call.1} parent=5 // pred_fallthru
        _
      %p114 = scmp.lt.s32.totalorder %s12, 2
      // Predicated region
      $region17: #{tpu_custom_call.1} parent=5 // pred_check
        %p115 = pneg %p114
      $region18: #{tpu_custom_call.1} parent=5 // pred_check_branch
        %117 = sbr.rel (%p115) target = $region20
      $region19: #{tpu_custom_call.1} parent=5 // pred_region
        // Predicated region
        $region21: #{tpu_custom_call.1} parent=19 // pred_check
          %p118 = pneg %p53
        $region22: #{tpu_custom_call.1} parent=19 // pred_check_branch
          %120 = sbr.rel (%p118) target = $region24
        $region23: #{tpu_custom_call.1} parent=19 // pred_region
          %s121 = smul.u32 2, %s12
          %p122 = scmp.lt.s32.totalorder %s121, 3
          %s123 = scalar_select %p122, %s121, 3
          %s124 = smul.addr %s123, 8
          %s125 = scalar_lea.vmem %s1, %s124
          %s126 = smul.u32 2, %s12
        $region24: #{tpu_custom_call.1} parent=19 // pred_fallthru
          _
      $region20: #{tpu_custom_call.1} parent=5 // pred_fallthru
        _
      %p127 = scmp.le.s32.totalorder 1, %s12
      %p128 = scmp.lt.s32.totalorder %s12, 3
      %p129 = pnand %p127, %p128
      %p130 = pneg %p129
      // Predicated region
      $region25: #{tpu_custom_call.1} parent=5 // pred_check
        _
      $region26: #{tpu_custom_call.1} parent=5 // pred_check_branch
        %132 = sbr.rel (%p129) target = $region28
      $region27: #{tpu_custom_call.1} parent=5 // pred_region
        %s133 = ssub.s32 %s12, 1
        // Predicated region
        $region29: #{tpu_custom_call.1} parent=27 // pred_check
          %p134 = pneg %p33
        $region30: #{tpu_custom_call.1} parent=27 // pred_check_branch
          %136 = sbr.rel (%p134) target = $region32
        $region31: #{tpu_custom_call.1} parent=27 // pred_region
          %138 = dma.done [#allocation3], 8192
        $region32: #{tpu_custom_call.1} parent=27 // pred_fallthru
          _
        %p139 = pneg %p33
        %p140 = pneg %p30
        %s141 = smul.u32 2, %s17
        %p142 = scmp.lt.s32.totalorder %s141, 3
        %s143 = scalar_select %p142, %s141, 3
        %s144 = smul.addr %s143, 8
        %s145 = scalar_lea.vmem %s1, %s144
        %p146 = pneg %p59
        %p147 = pneg %p56
        %p148 = pneg %p85
        %p149 = pneg %p82
        %s150 = sand.u32 %s72, 1
        %s151 = scalar_lea.sflag [#allocation4], %s150
        %s152 = sand.u32 %s72, 1
        %s153 = smul.addr %s152, 16
        %s154 = scalar_lea.vmem [#allocation5], %s153
        %s155 = smul.u32 2, %s17
        %p156 = scmp.lt.s32.totalorder %s155, 3
        %s157 = scalar_select %p156, %s155, 3
        %s158 = smul.addr %s157, 8
        %s159 = scalar_lea.vmem %s1, %s158
        %s160 = smul.u32 2, %s17
        %s161 = smul.u32 2, %s17
        %v162 = vld [vmem:[%s159] sm:$0xff]
        %v163 = vld [vmem:[%s159 + $0x8] sm:$0xff]
        %v164 = vld [vmem:[#allocation2] sm:$0xff]
        %vm165 = vcmask 64512
        %v167 = vsel %vm165, %v162, 0
        %v170 = vsel %vm165, %v163, 0
        %172 = vmatpush.msra.mxu0 0.0
        %173 = vmatpush.msra.mxu0 0.0
        %174 = vmatpush.msra.mxu0 0.0
        %175 = vmatpush.msra.mxu0 0.0
        %176 = vmatpush.msra.mxu0 0.0
        %177 = vmatpush.msra.mxu0 0.0
        %178 = vmatpush.msra.mxu0 0.0
        %179 = vmatpush.msra.mxu0 0.0
        %180 = vmatpush.msra.mxu0 0.0
        %181 = vmatpush.msra.mxu0 0.0
        %182 = vmatpush.msra.mxu0 0.0
        %183 = vmatpush.msra.mxu0 0.0
        %184 = vmatpush.msra.mxu0 0.0
        %185 = vmatpush.msra.mxu0 0.0
        %186 = vmatpush.msra.mxu0 0.0
        %187 = vmatpush.msra.mxu0 %v164
        %188 = vmatmul.f32.gmra.mxu0 %v167
        %v189 = vpop.f32.mrf.mxu0
        %v190 = vadd.f32 0.0, %v189
        %191 = vmatmul.f32.gmra.mxu0 %v170
        %v192 = vpop.f32.mrf.mxu0
        %v193 = vadd.f32 0.0, %v192
        %194 = vdwg.mxu0
        %v195 = vmax.f32 %v190, 0.0
        %v196 = vmax.f32 %v193, 0.0
        %s197 = scalar_lea.vmem [#allocation2], 128
        %v198 = vld [vmem:[%s197] sm:$0xff]
        %v199 = vld [vmem:[%s197 + $0x8] sm:$0xff]
        %v200 = vld [vmem:[%s197 + $0x10] sm:$0xff]
        %v201 = vld [vmem:[%s197 + $0x18] sm:$0xff]
        %v202 = vld [vmem:[%s197 + $0x20] sm:$0xff]
        %v203 = vld [vmem:[%s197 + $0x28] sm:$0xff]
        %v204 = vld [vmem:[%s197 + $0x30] sm:$0xff]
        %v205 = vld [vmem:[%s197 + $0x38] sm:$0xff]
        %v206 = vld [vmem:[%s197 + $0x40] sm:$0xff]
        %v207 = vld [vmem:[%s197 + $0x48] sm:$0xff]
        %v208 = vld [vmem:[%s197 + $0x50] sm:$0xff]
        %v209 = vld [vmem:[%s197 + $0x58] sm:$0xff]
        %v210 = vld [vmem:[%s197 + $0x60] sm:$0xff]
        %v211 = vld [vmem:[%s197 + $0x68] sm:$0xff]
        %v212 = vld [vmem:[%s197 + $0x70] sm:$0xff]
        %v213 = vld [vmem:[%s197 + $0x78] sm:$0xff]
        %214 = vmatpush.msra.mxu0 %v213
        %215 = vmatpush.msra.mxu0 %v212
        %216 = vmatpush.msra.mxu0 %v211
        %217 = vmatpush.msra.mxu0 %v210
        %218 = vmatpush.msra.mxu0 %v209
        %219 = vmatpush.msra.mxu0 %v208
        %220 = vmatpush.msra.mxu0 %v207
        %221 = vmatpush.msra.mxu0 %v206
        %222 = vmatpush.msra.mxu0 %v205
        %223 = vmatpush.msra.mxu0 %v204
        %224 = vmatpush.msra.mxu0 %v203
        %225 = vmatpush.msra.mxu0 %v202
        %226 = vmatpush.msra.mxu0 %v201
        %227 = vmatpush.msra.mxu0 %v200
        %228 = vmatpush.msra.mxu0 %v199
        %229 = vmatpush.msra.mxu0 %v198
        %230 = vmatmul.f32.gmra.mxu0 %v195
        %v231 = vpop.f32.mrf.mxu0
        %v232 = vadd.f32 0.0, %v231
        %233 = vmatmul.f32.gmra.mxu0 %v196
        %v234 = vpop.f32.mrf.mxu0
        %v235 = vadd.f32 0.0, %v234
        %236 = vdwg.mxu0
        %v237 = vmax.f32 %v232, 0.0
        %v238 = vmax.f32 %v235, 0.0
        %s239 = scalar_lea.vmem [#allocation2], 256
        %v240 = vld [vmem:[%s239] sm:$0xff]
        %v241 = vld [vmem:[%s239 + $0x8] sm:$0xff]
        %v242 = vld [vmem:[%s239 + $0x10] sm:$0xff]
        %v243 = vld [vmem:[%s239 + $0x18] sm:$0xff]
        %v244 = vld [vmem:[%s239 + $0x20] sm:$0xff]
        %v245 = vld [vmem:[%s239 + $0x28] sm:$0xff]
        %v246 = vld [vmem:[%s239 + $0x30] sm:$0xff]
        %v247 = vld [vmem:[%s239 + $0x38] sm:$0xff]
        %v248 = vld [vmem:[%s239 + $0x40] sm:$0xff]
        %v249 = vld [vmem:[%s239 + $0x48] sm:$0xff]
        %v250 = vld [vmem:[%s239 + $0x50] sm:$0xff]
        %v251 = vld [vmem:[%s239 + $0x58] sm:$0xff]
        %v252 = vld [vmem:[%s239 + $0x60] sm:$0xff]
        %v253 = vld [vmem:[%s239 + $0x68] sm:$0xff]
        %v254 = vld [vmem:[%s239 + $0x70] sm:$0xff]
        %v255 = vld [vmem:[%s239 + $0x78] sm:$0xff]
        %256 = vmatpush.msra.mxu0 %v255
        %257 = vmatpush.msra.mxu0 %v254
        %258 = vmatpush.msra.mxu0 %v253
        %259 = vmatpush.msra.mxu0 %v252
        %260 = vmatpush.msra.mxu0 %v251
        %261 = vmatpush.msra.mxu0 %v250
        %262 = vmatpush.msra.mxu0 %v249
        %263 = vmatpush.msra.mxu0 %v248
        %264 = vmatpush.msra.mxu0 %v247
        %265 = vmatpush.msra.mxu0 %v246
        %266 = vmatpush.msra.mxu0 %v245
        %267 = vmatpush.msra.mxu0 %v244
        %268 = vmatpush.msra.mxu0 %v243
        %269 = vmatpush.msra.mxu0 %v242
        %270 = vmatpush.msra.mxu0 %v241
        %271 = vmatpush.msra.mxu0 %v240
        %272 = vmatmul.f32.gmra.mxu0 %v237
        %v273 = vpop.f32.mrf.mxu0
        %v274 = vadd.f32 0.0, %v273
        %275 = vmatmul.f32.gmra.mxu0 %v238
        %v276 = vpop.f32.mrf.mxu0
        %v277 = vadd.f32 0.0, %v276
        %278 = vdwg.mxu0
        %v279 = vmax.f32 %v274, 0.0
        %v280 = vmax.f32 %v277, 0.0
        %s281 = scalar_lea.vmem [#allocation2], 384
        %v282 = vld [vmem:[%s281] sm:$0xff]
        %v283 = vld [vmem:[%s281 + $0x8] sm:$0xff]
        %v284 = vld [vmem:[%s281 + $0x10] sm:$0xff]
        %v285 = vld [vmem:[%s281 + $0x18] sm:$0xff]
        %v286 = vld [vmem:[%s281 + $0x20] sm:$0xff]
        %v287 = vld [vmem:[%s281 + $0x28] sm:$0xff]
        %v288 = vld [vmem:[%s281 + $0x30] sm:$0xff]
        %v289 = vld [vmem:[%s281 + $0x38] sm:$0xff]
        %v290 = vld [vmem:[%s281 + $0x40] sm:$0xff]
        %v291 = vld [vmem:[%s281 + $0x48] sm:$0xff]
        %v292 = vld [vmem:[%s281 + $0x50] sm:$0xff]
        %v293 = vld [vmem:[%s281 + $0x58] sm:$0xff]
        %v294 = vld [vmem:[%s281 + $0x60] sm:$0xff]
        %v295 = vld [vmem:[%s281 + $0x68] sm:$0xff]
        %v296 = vld [vmem:[%s281 + $0x70] sm:$0xff]
        %v297 = vld [vmem:[%s281 + $0x78] sm:$0xff]
        %298 = vmatpush.msra.mxu0 %v297
        %299 = vmatpush.msra.mxu0 %v296
        %300 = vmatpush.msra.mxu0 %v295
        %301 = vmatpush.msra.mxu0 %v294
        %302 = vmatpush.msra.mxu0 %v293
        %303 = vmatpush.msra.mxu0 %v292
        %304 = vmatpush.msra.mxu0 %v291
        %305 = vmatpush.msra.mxu0 %v290
        %306 = vmatpush.msra.mxu0 %v289
        %307 = vmatpush.msra.mxu0 %v288
        %308 = vmatpush.msra.mxu0 %v287
        %309 = vmatpush.msra.mxu0 %v286
        %310 = vmatpush.msra.mxu0 %v285
        %311 = vmatpush.msra.mxu0 %v284
        %312 = vmatpush.msra.mxu0 %v283
        %313 = vmatpush.msra.mxu0 %v282
        %314 = vmatmul.f32.gmra.mxu0 %v279
        %v315 = vpop.f32.mrf.mxu0
        %v316 = vadd.f32 0.0, %v315
        %317 = vmatmul.f32.gmra.mxu0 %v280
        %v318 = vpop.f32.mrf.mxu0
        %v319 = vadd.f32 0.0, %v318
        %320 = vdwg.mxu0
        %321 = vst [vmem:[%s154] sm:$0xff] %v316
        %322 = vst [vmem:[%s154 + $0x8] sm:$0xff] %v319
        %s323 = sand.u32 %s72, 1
        %s324 = scalar_lea.sflag [#allocation4], %s323
        %s325 = sand.u32 %s72, 1
        %s326 = smul.addr %s325, 16
        %s327 = scalar_lea.vmem [#allocation5], %s326
        // Predicated region
        $region33: #{tpu_custom_call.1} parent=27 // pred_check
          %p328 = pneg %p82
        $region34: #{tpu_custom_call.1} parent=27 // pred_check_branch
          %330 = sbr.rel (%p328) target = $region36
        $region35: #{tpu_custom_call.1} parent=27 // pred_region
          %s331 = smul.u32 2, %s17
          %333 = vsyncadd %s324, 0
          %s334 = smul.addr %s331, 8
          %s335 = scalar_lea.hbm %s2, %s334
          %s336 = sshll.u32 %s327, 4
          %s337 = int_to_ptr.vmem [resolvable:$true] %s336
          %s338 = sshll.u32 %s335, 4
          %s339 = int_to_ptr.hbm [resolvable:$true] %s338
          %344 = dma.vmem_to_hbm [thread:$0]  %s337, 256, %s339, %s324, 128, 128, 8
        $region36: #{tpu_custom_call.1} parent=27 // pred_fallthru
          _
      $region28: #{tpu_custom_call.1} parent=5 // pred_fallthru
        _
      %p345 = scmp.le.s32.totalorder 2, %s12
      // Predicated region
      $region37: #{tpu_custom_call.1} parent=5 // pred_check
        %p346 = pneg %p345
      $region38: #{tpu_custom_call.1} parent=5 // pred_check_branch
        %348 = sbr.rel (%p346) target = $region40
      $region39: #{tpu_custom_call.1} parent=5 // pred_region
        %s349 = ssub.s32 %s12, 2
        // Predicated region
        $region41: #{tpu_custom_call.1} parent=39 // pred_check
          %p350 = pneg %p88
        $region42: #{tpu_custom_call.1} parent=39 // pred_check_branch
          %352 = sbr.rel (%p350) target = $region44
        $region43: #{tpu_custom_call.1} parent=39 // pred_region
          %s353 = sand.u32 %s73, 1
          %s354 = scalar_lea.sflag [#allocation4], %s353
          %s355 = sand.u32 %s73, 1
          %s356 = smul.addr %s355, 16
          %s357 = scalar_lea.vmem [#allocation5], %s356
          %359 = dma.done %s354, 256
        $region44: #{tpu_custom_call.1} parent=39 // pred_fallthru
          _
      $region40: #{tpu_custom_call.1} parent=5 // pred_fallthru
        _
    $region6: #{tpu_custom_call.1} parent=1 // loop_footer
      %s16 = sadd.s32 1, %s12
    $region7: #{tpu_custom_call.1} parent=1 // loop_footer_branch
      %11 = sbr.rel target = $region3
    $region8: #{tpu_custom_call.1} parent=1 // loop_exit
      _
    %360 = vsyncpa [#allocation3], 1
    %s361 = scalar_lea.sflag [#allocation3], 1
    %362 = vsyncpa %s361, 1
    %363 = vsyncpa [#allocation4], 1
    %s364 = scalar_lea.sflag [#allocation4], 1
    %365 = vsyncpa %s364, 1

</llo_original>
